<compile_context>
chip_gen: v7x
topology: tpu7x:2x2x1
jax: 0.10.0
libtpu: 0.0.40
codegen_flags: <defaults>
</compile_context>

<pallas_src>
import jax
import jax.numpy as jnp
from jax import lax
from jax.experimental import pallas as pl
from jax.experimental.pallas import tpu as pltpu


_VMEM_LIMIT_BYTES = 48 * 1024 * 1024   # safe on v5e/v6e (128 MiB) and v7x (64 MiB)
_FULLK_MAX_D = 2048                    # collapse the K axis entirely up to this D_pad


# --------------------------------------------------------------------------
# Pass 1: embed = x @ W.T, L2-normalize rows (f.normalize, p=2, dim=1),
#         emit both [N, D] and [D, N] layouts of the normalized embeddings.
# --------------------------------------------------------------------------
def _embed_normalize_kernel(x_ref, wt_ref, en_ref, ent_ref):
    # wt is W.T (pre-transposed in the wrapper), so this is a plain
    # [tm, dp] x [dp, dp] MXU matmul with f32 accumulation.
    embed = lax.dot_general(
        x_ref[...], wt_ref[...],
        dimension_numbers=(((1,), (0,)), ((), ())),
        preferred_element_type=jnp.float32,
    )
    # f.normalize: x / max(||x||_2, 1e-12)  ==  x * rsqrt(max(||x||^2, 1e-24))
    sumsq = jnp.sum(embed * embed, axis=-1, keepdims=True)
    inv = lax.rsqrt(jnp.maximum(sumsq, 1e-24))
    en = (embed * inv).astype(en_ref.dtype)
    en_ref[...] = en
    ent_ref[...] = en.T          # one transpose per row tile, reused by Pass 2


# --------------------------------------------------------------------------
# Pass 2a: full-K Gram distance tile (no accumulator, no output revisit).
# --------------------------------------------------------------------------
def _gram_dist_kernel_fullk(row_ref, colt_ref, out_ref):
    sim = lax.dot_general(
        row_ref[...], colt_ref[...],                     # [tm, dp] x [dp, tn]
        dimension_numbers=(((1,), (0,)), ((), ())),
        preferred_element_type=jnp.float32,
    )
    out_ref[...] = (1.0 - sim).astype(out_ref.dtype)


# --------------------------------------------------------------------------
# Pass 2b: K-tiled fallback for very large D (VMEM accumulator; first K step
#          writes the accumulator directly instead of zero + add).
# --------------------------------------------------------------------------
def _gram_dist_kernel_acc(row_ref, colt_ref, out_ref, acc_ref):
    k = pl.program_id(2)
    partial = lax.dot_general(
        row_ref[...], colt_ref[...],                     # [tm, tk] x [tk, tn]
        dimension_numbers=(((1,), (0,)), ((), ())),
        preferred_element_type=jnp.float32,
    )

    @pl.when(k == 0)
    def _():
        acc_ref[...] = partial

    @pl.when(k > 0)
    def _():
        acc_ref[...] += partial

    @pl.when(k == pl.num_programs(2) - 1)
    def _():
        out_ref[...] = (1.0 - acc_ref[...]).astype(out_ref.dtype)


# --------------------------------------------------------------------------
# Wrappers.
# --------------------------------------------------------------------------
def _round_up(x, m):
    return ((x + m - 1) // m) * m


def _pick_tile(padded_dim, preferred):
    """Largest multiple of 128 that divides padded_dim and is <= preferred."""
    t = min(preferred, padded_dim)
    while padded_dim % t:
        t -= 128
    return t


def _normalized_embeddings(x, wt, *, tm, out_dtype):
    np_, dp = x.shape
    return pl.pallas_call(
        _embed_normalize_kernel,
        out_shape=(
            jax.ShapeDtypeStruct((np_, dp), out_dtype),   # embed_n   [N, D]
            jax.ShapeDtypeStruct((dp, np_), out_dtype),   # embed_n.T [D, N]
        ),
        grid_spec=pltpu.PrefetchScalarGridSpec(
            num_scalar_prefetch=0,
            grid=(np_ // tm,),
            in_specs=[
                pl.BlockSpec((tm, dp), lambda i: (i, 0)),
                # W.T stays resident; constant index_map -> single-buffer it.
                pl.BlockSpec((dp, dp), lambda i: (0, 0),
                             pipeline_mode=pl.Buffered(1)),
            ],
            out_specs=[
                pl.BlockSpec((tm, dp), lambda i: (i, 0)),
                pl.BlockSpec((dp, tm), lambda i: (0, i)),
            ],
        ),
        compiler_params=pltpu.CompilerParams(
            dimension_semantics=("parallel",),
            vmem_limit_bytes=_VMEM_LIMIT_BYTES,
        ),
    )(x, wt)


def _cosine_distance_matrix(embed_n, embed_nt, *, tm, tn, tk_max):
    np_, dp = embed_n.shape

    if dp <= _FULLK_MAX_D:
        # Single-shot contraction per output tile: no K axis, no accumulator.
        return pl.pallas_call(
            _gram_dist_kernel_fullk,
            out_shape=jax.ShapeDtypeStruct((np_, np_), jnp.float32),
            grid_spec=pltpu.PrefetchScalarGridSpec(
                num_scalar_prefetch=0,
                grid=(np_ // tm, np_ // tn),
                in_specs=[
                    pl.BlockSpec((tm, dp), lambda i, j: (i, 0)),   # row tiles
                    pl.BlockSpec((dp, tn), lambda i, j: (0, j)),   # col tiles (transposed layout)
                ],
                out_specs=pl.BlockSpec((tm, tn), lambda i, j: (i, j)),
            ),
            compiler_params=pltpu.CompilerParams(
                dimension_semantics=("parallel", "parallel"),
                vmem_limit_bytes=_VMEM_LIMIT_BYTES,
            ),
        )(embed_n, embed_nt)

    # Large-D fallback: K-tiled with VMEM accumulator, reduction axis last.
    tk = _pick_tile(dp, tk_max)
    return pl.pallas_call(
        _gram_dist_kernel_acc,
        out_shape=jax.ShapeDtypeStruct((np_, np_), jnp.float32),
        grid_spec=pltpu.PrefetchScalarGridSpec(
            num_scalar_prefetch=0,
            grid=(np_ // tm, np_ // tn, dp // tk),
            in_specs=[
                pl.BlockSpec((tm, tk), lambda i, j, k: (i, k)),
                pl.BlockSpec((tk, tn), lambda i, j, k: (k, j)),
            ],
            out_specs=pl.BlockSpec((tm, tn), lambda i, j, k: (i, j)),
            scratch_shapes=[pltpu.VMEM((tm, tn), jnp.float32)],
        ),
        compiler_params=pltpu.CompilerParams(
            dimension_semantics=("parallel", "parallel", "arbitrary"),
            vmem_limit_bytes=_VMEM_LIMIT_BYTES,
        ),
    )(embed_n, embed_nt)


def batch_forward_within(points, weight, *, compute_dtype=jnp.bfloat16,
                         tile=512, tk_max=2048):
    """points: [N, D]; weight: [D, D] (PyTorch Linear [out, in] convention).

    Default compute_dtype=bfloat16 feeds the MXU at its native rate with f32
    accumulation and f32 normalization (tolerance ~5e-2 on 1 - cos).  Pass
    compute_dtype=jnp.float32 for the tighter-precision path.
    """
    n, d = points.shape
    assert weight.shape == (d, d)

    # Choose the output tile first, then pad N up to a multiple of it so the
    # Gram kernel never collapses to 128-wide tiles for awkward sizes.
    t = _round_up(min(tile, _round_up(n, 128)), 128)
    np_ = _round_up(n, t)
    dp = _round_up(d, 128)

    # Build padded operands directly in compute_dtype; pre-transpose W once
    # so every in-kernel dot is MXU-native [M,K]x[K,N].
    x = jnp.pad(points.astype(compute_dtype), ((0, np_ - n), (0, dp - d)))
    wt = jnp.pad(weight.T.astype(compute_dtype), ((0, dp - d), (0, dp - d)))

    # Padded rows/cols are zero -> zero embeddings (eps-clamped norm), so the
    # padded region never pollutes the valid [:n, :n] block.
    embed_n, embed_nt = _normalized_embeddings(x, wt, tm=t, out_dtype=compute_dtype)
    dist = _cosine_distance_matrix(embed_n, embed_nt, tm=t, tn=t, tk_max=tk_max)
    return dist[:n, :n]


def init_params(input_dim, *, iden_init=True, alpha_mu=1.0, alpha_sigma=0.1, seed=0):
    """Deterministic parameter construction mirroring ParameterizedCosine.__init__."""
    key = jax.random.PRNGKey(seed)
    k_alpha, k_w = jax.random.split(key)
    # linkAlpha is a parameter of the module but unused by batchForwardWithin.
    link_alpha = alpha_mu + alpha_sigma * jax.random.normal(k_alpha, (1,), jnp.float32)
    if iden_init:
        weight = jnp.eye(input_dim, dtype=jnp.float32)
    else:
        bound = 1.0 / jnp.sqrt(input_dim)  # torch.nn.Linear default init
        weight = jax.random.uniform(
            k_w, (input_dim, input_dim), jnp.float32, -bound, bound
        )
    return weight, link_alpha


def _reference(points, weight):
    embed = points @ weight.T
    norm = jnp.sqrt(jnp.sum(embed * embed, axis=-1, keepdims=True))
    embed_n = embed / jnp.maximum(norm, 1e-12)
    return 1.0 - embed_n @ embed_n.T


if __name__ == "__main__":
    N, D = 8, 32  # numPoints, inputDim (= outputDim)
    key = jax.random.PRNGKey(0)
    points = jax.random.normal(key, (N, D), jnp.float32)

    # Non-identity deterministic weight so the Linear layer actually matters.
    weight, link_alpha = init_params(D, iden_init=False, seed=0)
    ref = _reference(points, weight)

    # Default bf16 MXU path (f32 accumulation + normalization): loose tolerance.
    dist_bf16 = batch_forward_within(points, weight)
    dist_bf16 = jax.block_until_ready(dist_bf16)
    assert dist_bf16.shape == (N, N)
    assert jnp.allclose(dist_bf16, ref, atol=5e-2), "bf16 mismatch vs reference"

    # f32 path: module semantics within MXU f32 accumulation tolerance.
    dist_f32 = batch_forward_within(points, weight, compute_dtype=jnp.float32)
    dist_f32 = jax.block_until_ready(dist_f32)
    assert jnp.allclose(dist_f32, ref, atol=1e-5, rtol=1e-5), "f32 mismatch vs reference"

    print("KERNEL_OK")
</pallas_src>

<mosaic_0001>
module attributes {stable_mosaic.version = 11 : i64} {
  func.func @_embed_normalize_kernel(%arg0: i32, %arg1: memref<128x128xbf16, #tpu.memory_space<vmem>>, %arg2: memref<128x128xbf16, #tpu.memory_space<vmem>>, %arg3: memref<128x128xbf16, #tpu.memory_space<vmem>>, %arg4: memref<128x128xbf16, #tpu.memory_space<vmem>>) attributes {dimension_semantics = [#tpu.dimension_semantics<parallel>], iteration_bounds = array<i64: 1>, scalar_prefetch = 0 : i64, scratch_operands = 0 : i64, tpu.core_type = #tpu.core_type<tc>, window_params = [{transform_indices = @transform_0, window_bounds = array<i64: 128, 128>}, {pipeline_mode = #tpu.pipeline_mode<synchronous>, transform_indices = @transform_1, window_bounds = array<i64: 128, 128>}, {transform_indices = @transform_2, window_bounds = array<i64: 128, 128>}, {transform_indices = @transform_3, window_bounds = array<i64: 128, 128>}]} {
    %c0 = arith.constant 0 : index
    %c0_0 = arith.constant 0 : index
    %0 = vector.load %arg1[%c0, %c0_0] : memref<128x128xbf16, #tpu.memory_space<vmem>>, vector<128x128xbf16>
    %c0_1 = arith.constant 0 : index
    %c0_2 = arith.constant 0 : index
    %1 = vector.load %arg2[%c0_1, %c0_2] : memref<128x128xbf16, #tpu.memory_space<vmem>>, vector<128x128xbf16>
    %cst = arith.constant dense<0.000000e+00> : vector<128x128xf32>
    %2 = tpu.matmul %0, %1, %cst {dimension_numbers = #tpu.dot_dimension_numbers<[1], [0], [0], [1], [0, 0, 1, 1], [], []>} : vector<128x128xbf16>, vector<128x128xbf16>, vector<128x128xf32> -> vector<128x128xf32>
    %3 = arith.mulf %2, %2 : vector<128x128xf32>
    %cst_3 = arith.constant dense<0.000000e+00> : vector<128xf32>
    %4 = vector.multi_reduction <add>, %3, %cst_3 [1] : vector<128x128xf32> to vector<128xf32>
    %5 = vector.shape_cast %4 : vector<128xf32> to vector<128x1xf32>
    %cst_4 = arith.constant 1.000000e-24 : f32
    %6 = vector.broadcast %cst_4 : f32 to vector<128x1xf32>
    %7 = arith.maximumf %5, %6 : vector<128x1xf32>
    %8 = math.rsqrt %7 : vector<128x1xf32>
    %9 = vector.broadcast %8 : vector<128x1xf32> to vector<128x128xf32>
    %10 = arith.mulf %2, %9 : vector<128x128xf32>
    %11 = arith.truncf %10 : vector<128x128xf32> to vector<128x128xbf16>
    %c0_5 = arith.constant 0 : index
    %c0_6 = arith.constant 0 : index
    %12 = vector.load %arg3[%c0_5, %c0_6] : memref<128x128xbf16, #tpu.memory_space<vmem>>, vector<128x128xbf16>
    tpu.vector_store %arg3[%c0_5, %c0_6], %11 {strides = array<i32>} : memref<128x128xbf16, #tpu.memory_space<vmem>>, vector<128x128xbf16>,
    %13 = tpu.transpose %11, [1, 0] : vector<128x128xbf16> -> vector<128x128xbf16>
    %c0_7 = arith.constant 0 : index
    %c0_8 = arith.constant 0 : index
    %14 = vector.load %arg4[%c0_7, %c0_8] : memref<128x128xbf16, #tpu.memory_space<vmem>>, vector<128x128xbf16>
    tpu.vector_store %arg4[%c0_7, %c0_8], %13 {strides = array<i32>} : memref<128x128xbf16, #tpu.memory_space<vmem>>, vector<128x128xbf16>,
    return
  }
  func.func @transform_0(%arg0: i32) -> (i32, i32) {
    %c0_i32 = arith.constant 0 : i32
    %c0_i32_0 = arith.constant 0 : i32
    return %arg0, %c0_i32 : i32, i32
  }
  func.func @transform_1(%arg0: i32) -> (i32, i32) {
    %c0_i32 = arith.constant 0 : i32
    %c0_i32_0 = arith.constant 0 : i32
    %c0_i32_1 = arith.constant 0 : i32
    return %c0_i32, %c0_i32_0 : i32, i32
  }
  func.func @transform_2(%arg0: i32) -> (i32, i32) {
    %c0_i32 = arith.constant 0 : i32
    %c0_i32_0 = arith.constant 0 : i32
    return %arg0, %c0_i32 : i32, i32
  }
  func.func @transform_3(%arg0: i32) -> (i32, i32) {
    %c0_i32 = arith.constant 0 : i32
    %c0_i32_0 = arith.constant 0 : i32
    return %c0_i32, %arg0 : i32, i32
  }
}

</mosaic_0001>

<llo_original>
// kernel: tpu_custom_call.1
$region0: #{tpu_custom_call.1}
  #allocation0 [shape = 'u32[]', space=smem, size = 0x4, offset = 0x4, fixed_abs, tag = 'smem constant byte address 0x4 - core index']
  #allocation1 [shape = 'u32[144,128]{1,0:T(1,128)}', space=vmem, size = 0x12000, scoped, tag = 'internal scratch']
  %s0 = inlined_call_operand.hbm [shape: bf16[128,128], index: 0, kind: input, shape index: {}]
  %s1 = inlined_call_operand.hbm [shape: bf16[128,128], index: 1, kind: input, shape index: {}]
  %s2 = inlined_call_operand.hbm [shape: bf16[128,128], index: 2, kind: output, shape index: {0}]
  %s3 = inlined_call_operand.hbm [shape: bf16[128,128], index: 3, kind: output, shape index: {1}]
  %4 = xla_tuple %s2, %s3
  %s5 = sld [smem:[#allocation0]]
  $region34: #{tpu_custom_call.1} parent=0
    _
  %s7 = ssub.s32 1, %s5
  %s8 = scalar_select 0, %s7, %s5
  $region1: #{tpu_custom_call.1} parent=0
    #allocation2 [shape = 'u8[32768]{0}', space=vmem, size = 0x8000, scoped, tag = 'input window, operand 0, single buffered']
    #allocation3 [shape = 's32[1]{0}', space=sflag, size = 0x4, scoped, tag = 'scoped memory for tpu_custom_call.1']
    #allocation4 [shape = 's32[1]{0}', space=sflag, size = 0x4, scoped, tag = 'scoped memory for tpu_custom_call.1']
    #allocation5 [shape = 'u8[32768]{0}', space=vmem, size = 0x8000, scoped, tag = 'input window, operand 1, single buffered']
    #allocation6 [shape = 's32[1]{0}', space=sflag, size = 0x4, scoped, tag = 'scoped memory for tpu_custom_call.1']
    #allocation7 [shape = 'u8[32768]{0}', space=vmem, size = 0x8000, scoped, tag = 'output window, operand 0, single buffered']
    #allocation8 [shape = 'u8[32768]{0}', space=vmem, size = 0x8000, scoped, tag = 'output window, operand 1, single buffered']
    #allocation9 [shape = 's32[1]{0}', space=sflag, size = 0x4, scoped, tag = 'scoped memory for tpu_custom_call.1']
    %9 = vsyncpa [#allocation3], 0
    %10 = vsyncpa [#allocation6], 0
    %11 = vsyncpa [#allocation4], 0
    %12 = vsyncpa [#allocation9], 0
    // Predicated region
    $region2: #{tpu_custom_call.1} parent=1 // pred_check
      _
    $region3: #{tpu_custom_call.1} parent=1 // pred_check_branch
      %14 = sbr.rel (0) target = $region5
    $region4: #{tpu_custom_call.1} parent=1 // pred_region
      %s16 = ssub.s32 1024, 1024
      %17 = vsyncadd [#allocation3], %s16
      %s18 = sshll.u32 [#allocation2], 4
      %s19 = int_to_ptr.vmem [resolvable:$true] %s18
      %24 = dma.hbm_to_vmem [thread:$0]  %s0, 1024, %s19, [#allocation3], 64, 64, 4
    $region5: #{tpu_custom_call.1} parent=1 // pred_fallthru
      _
    // Predicated region
    $region6: #{tpu_custom_call.1} parent=1 // pred_check
      _
    $region7: #{tpu_custom_call.1} parent=1 // pred_check_branch
      %26 = sbr.rel (0) target = $region9
    $region8: #{tpu_custom_call.1} parent=1 // pred_region
      %s28 = ssub.s32 1024, 1024
      %29 = vsyncadd [#allocation6], %s28
      %s30 = sshll.u32 [#allocation5], 4
      %s31 = int_to_ptr.vmem [resolvable:$true] %s30
      %36 = dma.hbm_to_vmem [thread:$0]  %s1, 1024, %s31, [#allocation6], 64, 64, 4
    $region9: #{tpu_custom_call.1} parent=1 // pred_fallthru
      _
    // Predicated region
    $region10: #{tpu_custom_call.1} parent=1 // pred_check
      _
    $region11: #{tpu_custom_call.1} parent=1 // pred_check_branch
      %38 = sbr.rel (0) target = $region13
    $region12: #{tpu_custom_call.1} parent=1 // pred_region
      %39 = dma.done [#allocation3], 1024
    $region13: #{tpu_custom_call.1} parent=1 // pred_fallthru
      _
    // Predicated region
    $region14: #{tpu_custom_call.1} parent=1 // pred_check
      _
    $region15: #{tpu_custom_call.1} parent=1 // pred_check_branch
      %41 = sbr.rel (0) target = $region17
    $region16: #{tpu_custom_call.1} parent=1 // pred_region
      %42 = dma.done [#allocation6], 1024
    $region17: #{tpu_custom_call.1} parent=1 // pred_fallthru
      _
    %v44 = vld [vmem:[#allocation2] sm:$0xf]
    %v45 = vld [vmem:[#allocation2 + $0x4] sm:$0xf]
    %v46 = vld [vmem:[#allocation2 + $0x8] sm:$0xf]
    %v47 = vld [vmem:[#allocation2 + $0xc] sm:$0xf]
    %v48 = vld [vmem:[#allocation2 + $0x10] sm:$0xf]
    %v49 = vld [vmem:[#allocation2 + $0x14] sm:$0xf]
    %v50 = vld [vmem:[#allocation2 + $0x18] sm:$0xf]
    %v51 = vld [vmem:[#allocation2 + $0x1c] sm:$0xf]
    %v52 = vld [vmem:[#allocation2 + $0x20] sm:$0xf]
    %v53 = vld [vmem:[#allocation2 + $0x24] sm:$0xf]
    %v54 = vld [vmem:[#allocation2 + $0x28] sm:$0xf]
    %v55 = vld [vmem:[#allocation2 + $0x2c] sm:$0xf]
    %v56 = vld [vmem:[#allocation2 + $0x30] sm:$0xf]
    %v57 = vld [vmem:[#allocation2 + $0x34] sm:$0xf]
    %v58 = vld [vmem:[#allocation2 + $0x38] sm:$0xf]
    %v59 = vld [vmem:[#allocation2 + $0x3c] sm:$0xf]
    %v60 = vld [vmem:[#allocation5] sm:$0xf]
    %v61 = vld [vmem:[#allocation5 + $0x4] sm:$0xf]
    %v62 = vld [vmem:[#allocation5 + $0x8] sm:$0xf]
    %v63 = vld [vmem:[#allocation5 + $0xc] sm:$0xf]
    %v64 = vld [vmem:[#allocation5 + $0x10] sm:$0xf]
    %v65 = vld [vmem:[#allocation5 + $0x14] sm:$0xf]
    %v66 = vld [vmem:[#allocation5 + $0x18] sm:$0xf]
    %v67 = vld [vmem:[#allocation5 + $0x1c] sm:$0xf]
    %v68 = vld [vmem:[#allocation5 + $0x20] sm:$0xf]
    %v69 = vld [vmem:[#allocation5 + $0x24] sm:$0xf]
    %v70 = vld [vmem:[#allocation5 + $0x28] sm:$0xf]
    %v71 = vld [vmem:[#allocation5 + $0x2c] sm:$0xf]
    %v72 = vld [vmem:[#allocation5 + $0x30] sm:$0xf]
    %v73 = vld [vmem:[#allocation5 + $0x34] sm:$0xf]
    %v74 = vld [vmem:[#allocation5 + $0x38] sm:$0xf]
    %v75 = vld [vmem:[#allocation5 + $0x3c] sm:$0xf]
    %v92 = vunpack.c.l.b16 %v44
    %v93 = vunpack.c.l.b16 %v45
    %v94 = vunpack.c.l.b16 %v46
    %v95 = vunpack.c.l.b16 %v47
    %v96 = vunpack.c.l.b16 %v48
    %v97 = vunpack.c.l.b16 %v49
    %v98 = vunpack.c.l.b16 %v50
    %v99 = vunpack.c.l.b16 %v51
    %v100 = vunpack.c.l.b16 %v52
    %v101 = vunpack.c.l.b16 %v53
    %v102 = vunpack.c.l.b16 %v54
    %v103 = vunpack.c.l.b16 %v55
    %v104 = vunpack.c.l.b16 %v56
    %v105 = vunpack.c.l.b16 %v57
    %v106 = vunpack.c.l.b16 %v58
    %v107 = vunpack.c.l.b16 %v59
    %v108 = vpack.c.b16 %v93, %v92
    %v109 = vpack.c.b16 %v95, %v94
    %v110 = vpack.c.b16 %v97, %v96
    %v111 = vpack.c.b16 %v99, %v98
    %v112 = vpack.c.b16 %v101, %v100
    %v113 = vpack.c.b16 %v103, %v102
    %v114 = vpack.c.b16 %v105, %v104
    %v115 = vpack.c.b16 %v107, %v106
    %v140 = vunpack.c.l.b16 %v60
    %v141 = vunpack.c.l.b16 %v61
    %v142 = vunpack.c.l.b16 %v62
    %v143 = vunpack.c.l.b16 %v63
    %v144 = vunpack.c.l.b16 %v64
    %v145 = vunpack.c.l.b16 %v65
    %v146 = vunpack.c.l.b16 %v66
    %v147 = vunpack.c.l.b16 %v67
    %v148 = vunpack.c.l.b16 %v68
    %v149 = vunpack.c.l.b16 %v69
    %v150 = vunpack.c.l.b16 %v70
    %v151 = vunpack.c.l.b16 %v71
    %v152 = vunpack.c.l.b16 %v72
    %v153 = vunpack.c.l.b16 %v73
    %v154 = vunpack.c.l.b16 %v74
    %v155 = vunpack.c.l.b16 %v75
    %v156 = vpack.c.b16 %v141, %v140
    %v157 = vpack.c.b16 %v143, %v142
    %v158 = vpack.c.b16 %v145, %v144
    %v159 = vpack.c.b16 %v147, %v146
    %v160 = vpack.c.b16 %v149, %v148
    %v161 = vpack.c.b16 %v151, %v150
    %v162 = vpack.c.b16 %v153, %v152
    %v163 = vpack.c.b16 %v155, %v154
    %172 = vmatprep.subr.bf16.mxu0 0
    %173 = vmatpush1.bf16.msra.mxu0 %v156
    %174 = vmatprep.subr.bf16.mxu0 0
    %175 = vmatpush1.bf16.msra.mxu0 %v157
    %176 = vmatprep.subr.bf16.mxu0 0
    %177 = vmatpush1.bf16.msra.mxu0 %v158
    %178 = vmatprep.subr.bf16.mxu0 0
    %179 = vmatpush1.bf16.msra.mxu0 %v159
    %180 = vmatprep.subr.bf16.mxu0 0
    %181 = vmatpush1.bf16.msra.mxu0 %v160
    %182 = vmatprep.subr.bf16.mxu0 0
    %183 = vmatpush1.bf16.msra.mxu0 %v161
    %184 = vmatprep.subr.bf16.mxu0 0
    %185 = vmatpush1.bf16.msra.mxu0 %v162
    %186 = vmatprep.subr.bf16.mxu0 0
    %187 = vmatpush1.bf16.msra.mxu0 %v163
    %188 = vmatprep.subr.bf16.mxu0 0
    %189 = vmatpush1.bf16.msra.mxu0 0
    %190 = vmatprep.subr.bf16.mxu0 0
    %191 = vmatpush1.bf16.msra.mxu0 0
    %192 = vmatprep.subr.bf16.mxu0 0
    %193 = vmatpush1.bf16.msra.mxu0 0
    %194 = vmatprep.subr.bf16.mxu0 0
    %195 = vmatpush1.bf16.msra.mxu0 0
    %196 = vmatprep.subr.bf16.mxu0 0
    %197 = vmatpush1.bf16.msra.mxu0 0
    %198 = vmatprep.subr.bf16.mxu0 0
    %199 = vmatpush1.bf16.msra.mxu0 0
    %200 = vmatprep.subr.bf16.mxu0 0
    %201 = vmatpush1.bf16.msra.mxu0 0
    %202 = vmatprep.subr.bf16.mxu0 0
    %203 = vmatpush1.bf16.msra.mxu0 0
    %204 = vmatprep.mubr.bf16.mxu0 0
    %205 = vmatmul.mubr.bf16.gmra.mrb[0].mxu0 %v108
    %v206 = vpop.f32.mrb[0].mxu0
    %v207 = vadd.f32 0.0, %v206
    %v208 = vpop.f32.mrb[0].mxu0
    %v209 = vpop.f32.mrb[0].mxu0
    %v210 = vadd.f32 0.0, %v209
    %v211 = vpop.f32.mrb[0].mxu0
    %212 = vmatprep.mubr.bf16.mxu0 0
    %213 = vmatmul.mubr.bf16.gmra.mrb[0].mxu0 %v109
    %v214 = vpop.f32.mrb[0].mxu0
    %v215 = vadd.f32 0.0, %v214
    %v216 = vpop.f32.mrb[0].mxu0
    %v217 = vpop.f32.mrb[0].mxu0
    %v218 = vadd.f32 0.0, %v217
    %v219 = vpop.f32.mrb[0].mxu0
    %220 = vmatprep.mubr.bf16.mxu0 0
    %221 = vmatmul.mubr.bf16.gmra.mrb[0].mxu0 %v110
    %v222 = vpop.f32.mrb[0].mxu0
    %v223 = vadd.f32 0.0, %v222
    %v224 = vpop.f32.mrb[0].mxu0
    %v225 = vpop.f32.mrb[0].mxu0
    %v226 = vadd.f32 0.0, %v225
    %v227 = vpop.f32.mrb[0].mxu0
    %228 = vmatprep.mubr.bf16.mxu0 0
    %229 = vmatmul.mubr.bf16.gmra.mrb[0].mxu0 %v111
    %v230 = vpop.f32.mrb[0].mxu0
    %v231 = vadd.f32 0.0, %v230
    %v232 = vpop.f32.mrb[0].mxu0
    %v233 = vpop.f32.mrb[0].mxu0
    %v234 = vadd.f32 0.0, %v233
    %v235 = vpop.f32.mrb[0].mxu0
    %236 = vmatprep.mubr.bf16.mxu0 0
    %237 = vmatmul.mubr.bf16.gmra.mrb[0].mxu0 %v112
    %v238 = vpop.f32.mrb[0].mxu0
    %v239 = vadd.f32 0.0, %v238
    %v240 = vpop.f32.mrb[0].mxu0
    %v241 = vpop.f32.mrb[0].mxu0
    %v242 = vadd.f32 0.0, %v241
    %v243 = vpop.f32.mrb[0].mxu0
    %244 = vmatprep.mubr.bf16.mxu0 0
    %245 = vmatmul.mubr.bf16.gmra.mrb[0].mxu0 %v113
    %v246 = vpop.f32.mrb[0].mxu0
    %v247 = vadd.f32 0.0, %v246
    %v248 = vpop.f32.mrb[0].mxu0
    %v249 = vpop.f32.mrb[0].mxu0
    %v250 = vadd.f32 0.0, %v249
    %v251 = vpop.f32.mrb[0].mxu0
    %252 = vmatprep.mubr.bf16.mxu0 0
    %253 = vmatmul.mubr.bf16.gmra.mrb[0].mxu0 %v114
    %v254 = vpop.f32.mrb[0].mxu0
    %v255 = vadd.f32 0.0, %v254
    %v256 = vpop.f32.mrb[0].mxu0
    %v257 = vpop.f32.mrb[0].mxu0
    %v258 = vadd.f32 0.0, %v257
    %v259 = vpop.f32.mrb[0].mxu0
    %260 = vmatprep.mubr.bf16.mxu0 0
    %261 = vmatmul.mubr.bf16.gmra.mrb[0].mxu0 %v115
    %v262 = vpop.f32.mrb[0].mxu0
    %v263 = vadd.f32 0.0, %v262
    %v264 = vpop.f32.mrb[0].mxu0
    %v265 = vpop.f32.mrb[0].mxu0
    %v266 = vadd.f32 0.0, %v265
    %v267 = vpop.f32.mrb[0].mxu0
    %268 = vdwg.mxu0
    %v269 = vmul.f32 %v207, %v207
    %v270 = vmul.f32 %v210, %v210
    %v271 = vmul.f32 %v215, %v215
    %v272 = vmul.f32 %v218, %v218
    %v273 = vmul.f32 %v223, %v223
    %v274 = vmul.f32 %v226, %v226
    %v275 = vmul.f32 %v231, %v231
    %v276 = vmul.f32 %v234, %v234
    %v277 = vmul.f32 %v239, %v239
    %v278 = vmul.f32 %v242, %v242
    %v279 = vmul.f32 %v247, %v247
    %v280 = vmul.f32 %v250, %v250
    %v281 = vmul.f32 %v255, %v255
    %v282 = vmul.f32 %v258, %v258
    %v283 = vmul.f32 %v263, %v263
    %v284 = vmul.f32 %v266, %v266
    %285 = vadd.xlane.f32.xlu0 %v269
    %v286 = vpop.xlane.xlu0 %285
    %287 = vadd.xlane.f32.xlu0 %v270
    %v288 = vpop.xlane.xlu0 %287
    %289 = vadd.xlane.f32.xlu0 %v271
    %v290 = vpop.xlane.xlu0 %289
    %291 = vadd.xlane.f32.xlu0 %v272
    %v292 = vpop.xlane.xlu0 %291
    %293 = vadd.xlane.f32.xlu0 %v273
    %v294 = vpop.xlane.xlu0 %293
    %295 = vadd.xlane.f32.xlu0 %v274
    %v296 = vpop.xlane.xlu0 %295
    %297 = vadd.xlane.f32.xlu0 %v275
    %v298 = vpop.xlane.xlu0 %297
    %299 = vadd.xlane.f32.xlu0 %v276
    %v300 = vpop.xlane.xlu0 %299
    %301 = vadd.xlane.f32.xlu0 %v277
    %v302 = vpop.xlane.xlu0 %301
    %303 = vadd.xlane.f32.xlu0 %v278
    %v304 = vpop.xlane.xlu0 %303
    %305 = vadd.xlane.f32.xlu0 %v279
    %v306 = vpop.xlane.xlu0 %305
    %307 = vadd.xlane.f32.xlu0 %v280
    %v308 = vpop.xlane.xlu0 %307
    %309 = vadd.xlane.f32.xlu0 %v281
    %v310 = vpop.xlane.xlu0 %309
    %311 = vadd.xlane.f32.xlu0 %v282
    %v312 = vpop.xlane.xlu0 %311
    %313 = vadd.xlane.f32.xlu0 %v283
    %v314 = vpop.xlane.xlu0 %313
    %315 = vadd.xlane.f32.xlu0 %v284
    %v316 = vpop.xlane.xlu0 %315
    %v317 = vmax.f32 %v286, 1e-24
    %v318 = vmax.f32 %v288, 1e-24
    %v319 = vmax.f32 %v290, 1e-24
    %v320 = vmax.f32 %v292, 1e-24
    %v321 = vmax.f32 %v294, 1e-24
    %v322 = vmax.f32 %v296, 1e-24
    %v323 = vmax.f32 %v298, 1e-24
    %v324 = vmax.f32 %v300, 1e-24
    %v325 = vmax.f32 %v302, 1e-24
    %v326 = vmax.f32 %v304, 1e-24
    %v327 = vmax.f32 %v306, 1e-24
    %v328 = vmax.f32 %v308, 1e-24
    %v329 = vmax.f32 %v310, 1e-24
    %v330 = vmax.f32 %v312, 1e-24
    %v331 = vmax.f32 %v314, 1e-24
    %v332 = vmax.f32 %v316, 1e-24
    %v333 = vrsqrt.pop %v317
    %v334 = vrsqrt.pop %v318
    %v335 = vrsqrt.pop %v319
    %v336 = vrsqrt.pop %v320
    %v337 = vrsqrt.pop %v321
    %v338 = vrsqrt.pop %v322
    %v339 = vrsqrt.pop %v323
    %v340 = vrsqrt.pop %v324
    %v341 = vrsqrt.pop %v325
    %v342 = vrsqrt.pop %v326
    %v343 = vrsqrt.pop %v327
    %v344 = vrsqrt.pop %v328
    %v345 = vrsqrt.pop %v329
    %v346 = vrsqrt.pop %v330
    %v347 = vrsqrt.pop %v331
    %v348 = vrsqrt.pop %v332
    %v349 = vmul.f32 %v207, %v333
    %v350 = vmul.f32 %v210, %v334
    %v351 = vmul.f32 %v215, %v335
    %v352 = vmul.f32 %v218, %v336
    %v353 = vmul.f32 %v223, %v337
    %v354 = vmul.f32 %v226, %v338
    %v355 = vmul.f32 %v231, %v339
    %v356 = vmul.f32 %v234, %v340
    %v357 = vmul.f32 %v239, %v341
    %v358 = vmul.f32 %v242, %v342
    %v359 = vmul.f32 %v247, %v343
    %v360 = vmul.f32 %v250, %v344
    %v361 = vmul.f32 %v255, %v345
    %v362 = vmul.f32 %v258, %v346
    %v363 = vmul.f32 %v263, %v347
    %v364 = vmul.f32 %v266, %v348
    %v365 = vpack.c.bf16 %v350, %v349
    %v366 = vpack.c.bf16 %v352, %v351
    %v367 = vpack.c.bf16 %v354, %v353
    %v368 = vpack.c.bf16 %v356, %v355
    %v369 = vpack.c.bf16 %v358, %v357
    %v370 = vpack.c.bf16 %v360, %v359
    %v371 = vpack.c.bf16 %v362, %v361
    %v372 = vpack.c.bf16 %v364, %v363
    %v381 = vunpack.c.l.b16 %v365
    %v382 = vunpack.c.h.b16 %v365
    %v383 = vunpack.c.l.b16 %v366
    %v384 = vunpack.c.h.b16 %v366
    %v385 = vunpack.c.l.b16 %v367
    %v386 = vunpack.c.h.b16 %v367
    %v387 = vunpack.c.l.b16 %v368
    %v388 = vunpack.c.h.b16 %v368
    %v389 = vunpack.c.l.b16 %v369
    %v390 = vunpack.c.h.b16 %v369
    %v391 = vunpack.c.l.b16 %v370
    %v392 = vunpack.c.h.b16 %v370
    %v393 = vunpack.c.l.b16 %v371
    %v394 = vunpack.c.h.b16 %v371
    %v395 = vunpack.c.l.b16 %v372
    %v396 = vunpack.c.h.b16 %v372
    %v397 = vpack.c.b16 %v381, %v381
    %v398 = vpack.c.b16 %v382, %v382
    %v399 = vpack.c.b16 %v383, %v383
    %v400 = vpack.c.b16 %v384, %v384
    %v401 = vpack.c.b16 %v385, %v385
    %v402 = vpack.c.b16 %v386, %v386
    %v403 = vpack.c.b16 %v387, %v387
    %v404 = vpack.c.b16 %v388, %v388
    %v405 = vpack.c.b16 %v389, %v389
    %v406 = vpack.c.b16 %v390, %v390
    %v407 = vpack.c.b16 %v391, %v391
    %v408 = vpack.c.b16 %v392, %v392
    %v409 = vpack.c.b16 %v393, %v393
    %v410 = vpack.c.b16 %v394, %v394
    %v411 = vpack.c.b16 %v395, %v395
    %v412 = vpack.c.b16 %v396, %v396
    %429 = vst [vmem:[#allocation7] sm:$0xf] %v397
    %430 = vst [vmem:[#allocation7 + $0x4] sm:$0xf] %v398
    %431 = vst [vmem:[#allocation7 + $0x8] sm:$0xf] %v399
    %432 = vst [vmem:[#allocation7 + $0xc] sm:$0xf] %v400
    %433 = vst [vmem:[#allocation7 + $0x10] sm:$0xf] %v401
    %434 = vst [vmem:[#allocation7 + $0x14] sm:$0xf] %v402
    %435 = vst [vmem:[#allocation7 + $0x18] sm:$0xf] %v403
    %436 = vst [vmem:[#allocation7 + $0x1c] sm:$0xf] %v404
    %437 = vst [vmem:[#allocation7 + $0x20] sm:$0xf] %v405
    %438 = vst [vmem:[#allocation7 + $0x24] sm:$0xf] %v406
    %439 = vst [vmem:[#allocation7 + $0x28] sm:$0xf] %v407
    %440 = vst [vmem:[#allocation7 + $0x2c] sm:$0xf] %v408
    %441 = vst [vmem:[#allocation7 + $0x30] sm:$0xf] %v409
    %442 = vst [vmem:[#allocation7 + $0x34] sm:$0xf] %v410
    %443 = vst [vmem:[#allocation7 + $0x38] sm:$0xf] %v411
    %444 = vst [vmem:[#allocation7 + $0x3c] sm:$0xf] %v412
    %445 = vxpose.xlu0.c.b16.start [1/8] %v365, 128
    %446 = vxpose.xlu0.c.b16.cont [2/8] %v366, 128
    %447 = vxpose.xlu0.c.b16.cont [3/8] %v367, 128
    %448 = vxpose.xlu0.c.b16.cont [4/8] %v368, 128
    %449 = vxpose.xlu0.c.b16.cont [5/8] %v369, 128
    %450 = vxpose.xlu0.c.b16.cont [6/8] %v370, 128
    %451 = vxpose.xlu0.c.b16.cont [7/8] %v371, 128
    %452 = vxpose.xlu0.c.b16.end [8/8] %v372, 128
    %v453 = vpop.trf.xlu0
    %v454 = vpop.trf.xlu0
    %v455 = vpop.trf.xlu0
    %v456 = vpop.trf.xlu0
    %v457 = vpop.trf.xlu0
    %v458 = vpop.trf.xlu0
    %v459 = vpop.trf.xlu0
    %v460 = vpop.trf.xlu0
    %v469 = vunpack.c.l.b16 %v453
    %v470 = vunpack.c.h.b16 %v453
    %v471 = vunpack.c.l.b16 %v454
    %v472 = vunpack.c.h.b16 %v454
    %v473 = vunpack.c.l.b16 %v455
    %v474 = vunpack.c.h.b16 %v455
    %v475 = vunpack.c.l.b16 %v456
    %v476 = vunpack.c.h.b16 %v456
    %v477 = vunpack.c.l.b16 %v457
    %v478 = vunpack.c.h.b16 %v457
    %v479 = vunpack.c.l.b16 %v458
    %v480 = vunpack.c.h.b16 %v458
    %v481 = vunpack.c.l.b16 %v459
    %v482 = vunpack.c.h.b16 %v459
    %v483 = vunpack.c.l.b16 %v460
    %v484 = vunpack.c.h.b16 %v460
    %v485 = vpack.c.b16 %v469, %v469
    %v486 = vpack.c.b16 %v470, %v470
    %v487 = vpack.c.b16 %v471, %v471
    %v488 = vpack.c.b16 %v472, %v472
    %v489 = vpack.c.b16 %v473, %v473
    %v490 = vpack.c.b16 %v474, %v474
    %v491 = vpack.c.b16 %v475, %v475
    %v492 = vpack.c.b16 %v476, %v476
    %v493 = vpack.c.b16 %v477, %v477
    %v494 = vpack.c.b16 %v478, %v478
    %v495 = vpack.c.b16 %v479, %v479
    %v496 = vpack.c.b16 %v480, %v480
    %v497 = vpack.c.b16 %v481, %v481
    %v498 = vpack.c.b16 %v482, %v482
    %v499 = vpack.c.b16 %v483, %v483
    %v500 = vpack.c.b16 %v484, %v484
    %517 = vst [vmem:[#allocation8] sm:$0xf] %v485
    %518 = vst [vmem:[#allocation8 + $0x4] sm:$0xf] %v486
    %519 = vst [vmem:[#allocation8 + $0x8] sm:$0xf] %v487
    %520 = vst [vmem:[#allocation8 + $0xc] sm:$0xf] %v488
    %521 = vst [vmem:[#allocation8 + $0x10] sm:$0xf] %v489
    %522 = vst [vmem:[#allocation8 + $0x14] sm:$0xf] %v490
    %523 = vst [vmem:[#allocation8 + $0x18] sm:$0xf] %v491
    %524 = vst [vmem:[#allocation8 + $0x1c] sm:$0xf] %v492
    %525 = vst [vmem:[#allocation8 + $0x20] sm:$0xf] %v493
    %526 = vst [vmem:[#allocation8 + $0x24] sm:$0xf] %v494
    %527 = vst [vmem:[#allocation8 + $0x28] sm:$0xf] %v495
    %528 = vst [vmem:[#allocation8 + $0x2c] sm:$0xf] %v496
    %529 = vst [vmem:[#allocation8 + $0x30] sm:$0xf] %v497
    %530 = vst [vmem:[#allocation8 + $0x34] sm:$0xf] %v498
    %531 = vst [vmem:[#allocation8 + $0x38] sm:$0xf] %v499
    %532 = vst [vmem:[#allocation8 + $0x3c] sm:$0xf] %v500
    // Predicated region
    $region18: #{tpu_custom_call.1} parent=1 // pred_check
      _
    $region19: #{tpu_custom_call.1} parent=1 // pred_check_branch
      %534 = sbr.rel (0) target = $region21
    $region20: #{tpu_custom_call.1} parent=1 // pred_region
      %s536 = ssub.s32 1024, 1024
      %537 = vsyncadd [#allocation4], %s536
      %s538 = sshll.u32 [#allocation7], 4
      %s539 = int_to_ptr.vmem [resolvable:$true] %s538
      %544 = dma.vmem_to_hbm [thread:$0]  %s539, 1024, %s2, [#allocation4], 64, 64, 4
    $region21: #{tpu_custom_call.1} parent=1 // pred_fallthru
      _
    // Predicated region
    $region22: #{tpu_custom_call.1} parent=1 // pred_check
      _
    $region23: #{tpu_custom_call.1} parent=1 // pred_check_branch
      %546 = sbr.rel (0) target = $region25
    $region24: #{tpu_custom_call.1} parent=1 // pred_region
      %s548 = ssub.s32 1024, 1024
      %549 = vsyncadd [#allocation9], %s548
      %s550 = sshll.u32 [#allocation8], 4
      %s551 = int_to_ptr.vmem [resolvable:$true] %s550
      %556 = dma.vmem_to_hbm [thread:$0]  %s551, 1024, %s3, [#allocation9], 64, 64, 4
    $region25: #{tpu_custom_call.1} parent=1 // pred_fallthru
      _
    // Predicated region
    $region26: #{tpu_custom_call.1} parent=1 // pred_check
      _
    $region27: #{tpu_custom_call.1} parent=1 // pred_check_branch
      %558 = sbr.rel (0) target = $region29
    $region28: #{tpu_custom_call.1} parent=1 // pred_region
      %559 = dma.done [#allocation4], 1024
    $region29: #{tpu_custom_call.1} parent=1 // pred_fallthru
      _
    // Predicated region
    $region30: #{tpu_custom_call.1} parent=1 // pred_check
      _
    $region31: #{tpu_custom_call.1} parent=1 // pred_check_branch
      %561 = sbr.rel (0) target = $region33
    $region32: #{tpu_custom_call.1} parent=1 // pred_region
      %562 = dma.done [#allocation9], 1024
    $region33: #{tpu_custom_call.1} parent=1 // pred_fallthru
      _
    %563 = vsyncpa [#allocation3], 1
    %564 = vsyncpa [#allocation6], 1
    %565 = vsyncpa [#allocation4], 1
    %566 = vsyncpa [#allocation9], 1

</llo_original>
